<compile_context>
chip_gen: v6e
topology: v6e:2x2x1
jax: 0.10.0
libtpu: 0.0.40
codegen_flags: <defaults>
</compile_context>

<pallas_src>
import jax
import jax.numpy as jnp
from jax.experimental import pallas as pl
from jax.experimental.pallas import tpu as pltpu

IN_FEATURES = 3
KPAD = 8          # layer-1 contraction dim zero-padded 3 -> 8 for the MXU path
HIDDEN = 128
ACTION_SIZE = 2
LANE = 128
SUBLANE = 8


def _round_up(n, m):
    return ((n + m - 1) // m) * m


def _cdiv(n, m):
    return (n + m - 1) // m


def policy_net_kernel(x_ref, w1_ref, b1_ref, w2_ref, b2_ref, o_ref):
    # x:  (TB, 8)    f32   streamed batch tile (features zero-padded 3 -> 8)
    # w1: (8, 128)   f32   VMEM-resident (rows 3..7 are zero)
    # b1: (1, 128)   f32   VMEM-resident
    # w2: (128, 128) bf16  VMEM-resident (lane-padded from (128, 2) with zeros)
    # b2: (1, 2)     f32   VMEM-resident
    # o:  (TB, 2)    f32   only the real action columns are written back
    # Layer 1 on the MXU (f32 operands, f32 accumulation); MXU has plenty of slack.
    h = jnp.dot(x_ref[...], w1_ref[...], preferred_element_type=jnp.float32) + b1_ref[...]
    h = jnp.maximum(h, 0.0)  # ReLU on the VPU

    # Layer 2 on the MXU: bf16 operands, f32 accumulation, lane-dense (128-wide) result.
    y = jnp.dot(h.astype(jnp.bfloat16), w2_ref[...], preferred_element_type=jnp.float32)

    # Keep only the 2 real action columns, add bias, 2*tanh (EUP), store narrow.
    o_ref[...] = 2.0 * jnp.tanh(y[:, :ACTION_SIZE] + b2_ref[...])
    # NOTE: self.softmax exists in __init__ but is never used in forward() -> omitted.


def prepare_params(w1, b1, w2, b2):
    """One-time parameter prep (cast / pad / reshape), hoisted out of the per-call path."""
    # Layer 1: zero-pad the contraction dim 3 -> 8, keep f32 for precision.
    w1p = jnp.zeros((KPAD, HIDDEN), jnp.float32).at[:IN_FEATURES, :].set(
        w1.astype(jnp.float32))
    b1p = b1.reshape(1, HIDDEN).astype(jnp.float32)
    # Layer 2: lane-pad the 2-wide head to 128 columns so the MXU result stays lane-dense.
    w2p = jnp.zeros((HIDDEN, LANE), jnp.bfloat16).at[:, :ACTION_SIZE].set(
        w2.astype(jnp.bfloat16))
    b2p = b2.reshape(1, ACTION_SIZE).astype(jnp.float32)
    return w1p, b1p, w2p, b2p


def policy_net_forward(x, params, *, tb=4096, split_threshold=1024):
    """y = 2 * tanh(relu(x @ w1 + b1) @ w2 + b2); params from prepare_params()."""
    w1p, b1p, w2p, b2p = params
    B = x.shape[0]
    x = x.astype(jnp.float32)

    # Pad the batch only to a multiple of 8 sublanes; then choose the tile count so that
    # TB divides the (slightly re-padded) batch. Waste is bounded by ~8 rows per tile.
    Bp = _round_up(max(B, 1), SUBLANE)
    n_tiles = _cdiv(Bp, tb)
    if Bp >= split_threshold and n_tiles < 2:
        n_tiles = 2  # v7x: make sure the "parallel" batch axis feeds both TensorCores.
    TB = _round_up(_cdiv(Bp, n_tiles), SUBLANE)
    Bpad = n_tiles * TB

    # Single pad: tail batch rows (zeros, sliced off below) + feature dim 3 -> 8 for the MXU.
    x = jnp.pad(x, ((0, Bpad - B), (0, KPAD - IN_FEATURES)))

    resident = lambda shape: pl.BlockSpec(shape, lambda i: (0, 0))

    out = pl.pallas_call(
        policy_net_kernel,
        out_shape=jax.ShapeDtypeStruct((Bpad, ACTION_SIZE), jnp.float32),
        grid=(n_tiles,),
        in_specs=[
            pl.BlockSpec((TB, KPAD), lambda i: (i, 0)),  # x streamed over the batch
            resident((KPAD, HIDDEN)),                    # w1 resident in VMEM
            resident((1, HIDDEN)),                       # b1 resident
            resident((HIDDEN, LANE)),                    # w2 (padded, bf16) resident
            resident((1, ACTION_SIZE)),                  # b2 resident
        ],
        out_specs=pl.BlockSpec((TB, ACTION_SIZE), lambda i: (i, 0)),  # narrow output
        compiler_params=pltpu.CompilerParams(
            dimension_semantics=("parallel",)),          # v7x: both TCs split the batch
    )(x, w1p, b1p, w2p, b2p)

    return out if Bpad == B else out[:B]


def init_params(key):
    """Deterministic init mimicking PyTorch Linear default uniform(-1/sqrt(fan_in), ...)."""
    k1, k2, k3, k4 = jax.random.split(key, 4)
    bound1 = 1.0 / jnp.sqrt(float(IN_FEATURES))
    bound2 = 1.0 / jnp.sqrt(float(HIDDEN))
    # stored as (in, out), i.e. transposed relative to PyTorch's (out, in)
    w1 = jax.random.uniform(k1, (IN_FEATURES, HIDDEN), jnp.float32, -bound1, bound1)
    b1 = jax.random.uniform(k2, (1, HIDDEN), jnp.float32, -bound1, bound1)
    w2 = jax.random.uniform(k3, (HIDDEN, ACTION_SIZE), jnp.float32, -bound2, bound2)
    b2 = jax.random.uniform(k4, (1, ACTION_SIZE), jnp.float32, -bound2, bound2)
    return w1, b1, w2, b2


def _reference(x, w1, b1, w2, b2):
    return 2.0 * jnp.tanh(jnp.maximum(x @ w1 + b1, 0.0) @ w2 + b2)


if __name__ == "__main__":
    key = jax.random.PRNGKey(0)
    k_params, k_x1, k_x2 = jax.random.split(key, 3)
    w1, b1, w2, b2 = init_params(k_params)
    params = prepare_params(w1, b1, w2, b2)   # one-time prep, reused across calls

    # Small RL-style batch (3 state features -> 2 actions), single tile.
    B = 8
    x = jax.random.normal(k_x1, (B, IN_FEATURES), jnp.float32)
    out = policy_net_forward(x, params)
    jax.block_until_ready(out)
    assert out.shape == (B, ACTION_SIZE)
    ref = _reference(x, w1, b1, w2, b2)
    # bf16 MXU operands in layer 2 -> loosened tolerance vs the all-f32 reference.
    assert jnp.allclose(out, ref, atol=2e-2, rtol=2e-2), "mismatch vs reference (B=8)"

    # Non-multiple-of-tile batch: exercises the multi-tile grid + 8-row tail padding path.
    B2 = 300
    x2 = jax.random.normal(k_x2, (B2, IN_FEATURES), jnp.float32)
    out2 = policy_net_forward(x2, params, tb=128)
    jax.block_until_ready(out2)
    assert out2.shape == (B2, ACTION_SIZE)
    ref2 = _reference(x2, w1, b1, w2, b2)
    assert jnp.allclose(out2, ref2, atol=2e-2, rtol=2e-2), "mismatch vs reference (B=300)"

    print("KERNEL_OK")
</pallas_src>

<mosaic_0001>
module attributes {stable_mosaic.version = 11 : i64} {
  func.func @policy_net_kernel(%arg0: i32, %arg1: memref<8x8xf32, #tpu.memory_space<vmem>>, %arg2: memref<8x128xf32, #tpu.memory_space<vmem>>, %arg3: memref<1x128xf32, #tpu.memory_space<vmem>>, %arg4: memref<128x128xbf16, #tpu.memory_space<vmem>>, %arg5: memref<1x2xf32, #tpu.memory_space<vmem>>, %arg6: memref<8x2xf32, #tpu.memory_space<vmem>>) attributes {dimension_semantics = [#tpu.dimension_semantics<parallel>], iteration_bounds = array<i64: 1>, scalar_prefetch = 0 : i64, scratch_operands = 0 : i64, tpu.core_type = #tpu.core_type<tc>, window_params = [{transform_indices = @transform_0, window_bounds = array<i64: 8, 8>}, {pipeline_mode = #tpu.pipeline_mode<synchronous>, transform_indices = @transform_1, window_bounds = array<i64: 8, 128>}, {pipeline_mode = #tpu.pipeline_mode<synchronous>, transform_indices = @transform_2, window_bounds = array<i64: 1, 128>}, {pipeline_mode = #tpu.pipeline_mode<synchronous>, transform_indices = @transform_3, window_bounds = array<i64: 128, 128>}, {pipeline_mode = #tpu.pipeline_mode<synchronous>, transform_indices = @transform_4, window_bounds = array<i64: 1, 2>}, {transform_indices = @transform_5, window_bounds = array<i64: 8, 2>}]} {
    %c0 = arith.constant 0 : index
    %c0_0 = arith.constant 0 : index
    %0 = vector.load %arg1[%c0, %c0_0] : memref<8x8xf32, #tpu.memory_space<vmem>>, vector<8x8xf32>
    %c0_1 = arith.constant 0 : index
    %c0_2 = arith.constant 0 : index
    %1 = vector.load %arg2[%c0_1, %c0_2] : memref<8x128xf32, #tpu.memory_space<vmem>>, vector<8x128xf32>
    %cst = arith.constant dense<0.000000e+00> : vector<8x128xf32>
    %2 = tpu.matmul %0, %1, %cst {dimension_numbers = #tpu.dot_dimension_numbers<[1], [0], [0], [1], [0, 0, 1, 1], [], []>} : vector<8x8xf32>, vector<8x128xf32>, vector<8x128xf32> -> vector<8x128xf32>
    %c0_3 = arith.constant 0 : index
    %c0_4 = arith.constant 0 : index
    %3 = vector.load %arg3[%c0_3, %c0_4] : memref<1x128xf32, #tpu.memory_space<vmem>>, vector<1x128xf32>
    %4 = vector.broadcast %3 : vector<1x128xf32> to vector<8x128xf32>
    %5 = arith.addf %2, %4 : vector<8x128xf32>
    %cst_5 = arith.constant 0.000000e+00 : f32
    %6 = vector.broadcast %cst_5 : f32 to vector<8x128xf32>
    %7 = arith.maximumf %5, %6 : vector<8x128xf32>
    %8 = arith.truncf %7 : vector<8x128xf32> to vector<8x128xbf16>
    %c0_6 = arith.constant 0 : index
    %c0_7 = arith.constant 0 : index
    %9 = vector.load %arg4[%c0_6, %c0_7] : memref<128x128xbf16, #tpu.memory_space<vmem>>, vector<128x128xbf16>
    %cst_8 = arith.constant dense<0.000000e+00> : vector<8x128xf32>
    %10 = tpu.matmul %8, %9, %cst_8 {dimension_numbers = #tpu.dot_dimension_numbers<[1], [0], [0], [1], [0, 0, 1, 1], [], []>} : vector<8x128xbf16>, vector<128x128xbf16>, vector<8x128xf32> -> vector<8x128xf32>
    %11 = vector.extract_strided_slice %10 {offsets = [0, 0], sizes = [8, 2], strides = [1, 1]} : vector<8x128xf32> to vector<8x2xf32>
    %c0_9 = arith.constant 0 : index
    %c0_10 = arith.constant 0 : index
    %12 = vector.load %arg5[%c0_9, %c0_10] : memref<1x2xf32, #tpu.memory_space<vmem>>, vector<1x2xf32>
    %13 = vector.broadcast %12 : vector<1x2xf32> to vector<8x2xf32>
    %14 = arith.addf %11, %13 : vector<8x2xf32>
    %15 = math.tanh %14 : vector<8x2xf32>
    %cst_11 = arith.constant 2.000000e+00 : f32
    %16 = vector.broadcast %cst_11 : f32 to vector<8x2xf32>
    %17 = arith.mulf %16, %15 : vector<8x2xf32>
    %c0_12 = arith.constant 0 : index
    %c0_13 = arith.constant 0 : index
    %18 = vector.load %arg6[%c0_12, %c0_13] : memref<8x2xf32, #tpu.memory_space<vmem>>, vector<8x2xf32>
    tpu.vector_store %arg6[%c0_12, %c0_13], %17 {strides = array<i32>} : memref<8x2xf32, #tpu.memory_space<vmem>>, vector<8x2xf32>,
    return
  }
  func.func @transform_0(%arg0: i32) -> (i32, i32) {
    %c0_i32 = arith.constant 0 : i32
    %c0_i32_0 = arith.constant 0 : i32
    return %arg0, %c0_i32 : i32, i32
  }
  func.func @transform_1(%arg0: i32) -> (i32, i32) {
    %c0_i32 = arith.constant 0 : i32
    %c0_i32_0 = arith.constant 0 : i32
    %c0_i32_1 = arith.constant 0 : i32
    return %c0_i32, %c0_i32_0 : i32, i32
  }
  func.func @transform_2(%arg0: i32) -> (i32, i32) {
    %c0_i32 = arith.constant 0 : i32
    %c0_i32_0 = arith.constant 0 : i32
    %c0_i32_1 = arith.constant 0 : i32
    return %c0_i32, %c0_i32_0 : i32, i32
  }
  func.func @transform_3(%arg0: i32) -> (i32, i32) {
    %c0_i32 = arith.constant 0 : i32
    %c0_i32_0 = arith.constant 0 : i32
    %c0_i32_1 = arith.constant 0 : i32
    return %c0_i32, %c0_i32_0 : i32, i32
  }
  func.func @transform_4(%arg0: i32) -> (i32, i32) {
    %c0_i32 = arith.constant 0 : i32
    %c0_i32_0 = arith.constant 0 : i32
    %c0_i32_1 = arith.constant 0 : i32
    return %c0_i32, %c0_i32_0 : i32, i32
  }
  func.func @transform_5(%arg0: i32) -> (i32, i32) {
    %c0_i32 = arith.constant 0 : i32
    %c0_i32_0 = arith.constant 0 : i32
    return %arg0, %c0_i32 : i32, i32
  }
}

</mosaic_0001>

<llo_original>
// kernel: tpu_custom_call.1
$region0: #{tpu_custom_call.1}
  #allocation0 [shape = 'u32[]', space=smem, size = 0x4, offset = 0x4, fixed_abs, tag = 'smem constant byte address 0x4 - core index']
  #allocation1 [shape = 'u32[144,128]{1,0:T(1,128)}', space=vmem, size = 0x12000, scoped, tag = 'internal scratch']
  %s0 = inlined_call_operand.hbm [shape: f32[8,8], index: 0, kind: input, shape index: {}]
  %s1 = inlined_call_operand.hbm [shape: f32[8,128], index: 1, kind: input, shape index: {}]
  %s2 = inlined_call_operand.vmem [shape: f32[1,128], index: 2, kind: input, shape index: {}]
  %s3 = inlined_call_operand.hbm [shape: bf16[128,128], index: 3, kind: input, shape index: {}]
  %s4 = inlined_call_operand.vmem [shape: f32[1,2], index: 4, kind: input, shape index: {}]
  %s5 = inlined_call_operand.vmem [shape: f32[8,2], index: 5, kind: output, shape index: {}]
  %s6 = sld [smem:[#allocation0]]
  $region42: #{tpu_custom_call.1} parent=0
    _
  %s8 = ssub.s32 1, %s6
  %s9 = scalar_select 0, %s8, %s6
  $region1: #{tpu_custom_call.1} parent=0
    #allocation2 [shape = 'u8[4096]{0}', space=vmem, size = 0x1000, scoped, tag = 'input window, operand 0, single buffered']
    #allocation3 [shape = 's32[1]{0}', space=sflag, size = 0x4, scoped, tag = 'scoped memory for tpu_custom_call.1']
    #allocation4 [shape = 'u8[4096]{0}', space=vmem, size = 0x1000, scoped, tag = 'input window, operand 1, single buffered']
    #allocation5 [shape = 's32[1]{0}', space=sflag, size = 0x4, scoped, tag = 'scoped memory for tpu_custom_call.1']
    #allocation6 [shape = 'u8[32768]{0}', space=vmem, size = 0x8000, scoped, tag = 'input window, operand 3, single buffered']
    %10 = vsyncpa [#allocation3], 0
    %11 = vsyncpa [#allocation5], 0
    // Predicated region
    $region2: #{tpu_custom_call.1} parent=1 // pred_check
      _
    $region3: #{tpu_custom_call.1} parent=1 // pred_check_branch
      %13 = sbr.rel (0) target = $region5
    $region4: #{tpu_custom_call.1} parent=1 // pred_region
      %s15 = ssub.s32 128, 128
      %16 = vsyncadd [#allocation3], %s15
      %s18 = sshll.u32 [#allocation2], 4
      %s19 = int_to_ptr.vmem [resolvable:$true] %s18
      %21 = dma.hbm_to_vmem [thread:$0]  %s0, 128, %s19, [#allocation3]
    $region5: #{tpu_custom_call.1} parent=1 // pred_fallthru
      _
    // Predicated region
    $region6: #{tpu_custom_call.1} parent=1 // pred_check
      _
    $region7: #{tpu_custom_call.1} parent=1 // pred_check_branch
      %23 = sbr.rel (0) target = $region9
    $region8: #{tpu_custom_call.1} parent=1 // pred_region
      %s25 = ssub.s32 128, 128
      %26 = vsyncadd [#allocation5], %s25
      %s28 = sshll.u32 [#allocation4], 4
      %s29 = int_to_ptr.vmem [resolvable:$true] %s28
      %31 = dma.hbm_to_vmem [thread:$0]  %s1, 128, %s29, [#allocation5]
    $region9: #{tpu_custom_call.1} parent=1 // pred_fallthru
      _
    // Predicated region
    $region10: #{tpu_custom_call.1} parent=1 // pred_check
      _
    $region11: #{tpu_custom_call.1} parent=1 // pred_check_branch
      %33 = sbr.rel (0) target = $region13
    $region12: #{tpu_custom_call.1} parent=1 // pred_region
      _
    $region13: #{tpu_custom_call.1} parent=1 // pred_fallthru
      _
    // Predicated region
    $region14: #{tpu_custom_call.1} parent=1 // pred_check
      _
    $region15: #{tpu_custom_call.1} parent=1 // pred_check_branch
      %35 = sbr.rel (0) target = $region17
    $region16: #{tpu_custom_call.1} parent=1 // pred_region
      %s37 = ssub.s32 1024, 1024
      %38 = vsyncadd [#allocation5], %s37
      %s39 = sshll.u32 [#allocation6], 4
      %s40 = int_to_ptr.vmem [resolvable:$true] %s39
      %45 = dma.hbm_to_vmem [thread:$0]  %s3, 1024, %s40, [#allocation5], 64, 64, 4
    $region17: #{tpu_custom_call.1} parent=1 // pred_fallthru
      _
    // Predicated region
    $region18: #{tpu_custom_call.1} parent=1 // pred_check
      _
    $region19: #{tpu_custom_call.1} parent=1 // pred_check_branch
      %47 = sbr.rel (0) target = $region21
    $region20: #{tpu_custom_call.1} parent=1 // pred_region
      _
    $region21: #{tpu_custom_call.1} parent=1 // pred_fallthru
      _
    // Predicated region
    $region22: #{tpu_custom_call.1} parent=1 // pred_check
      _
    $region23: #{tpu_custom_call.1} parent=1 // pred_check_branch
      %49 = sbr.rel (0) target = $region25
    $region24: #{tpu_custom_call.1} parent=1 // pred_region
      %50 = dma.done [#allocation3], 128
    $region25: #{tpu_custom_call.1} parent=1 // pred_fallthru
      _
    // Predicated region
    $region26: #{tpu_custom_call.1} parent=1 // pred_check
      _
    $region27: #{tpu_custom_call.1} parent=1 // pred_check_branch
      %52 = sbr.rel (0) target = $region29
    $region28: #{tpu_custom_call.1} parent=1 // pred_region
      %53 = dma.done [#allocation5], 128
    $region29: #{tpu_custom_call.1} parent=1 // pred_fallthru
      _
    // Predicated region
    $region30: #{tpu_custom_call.1} parent=1 // pred_check
      _
    $region31: #{tpu_custom_call.1} parent=1 // pred_check_branch
      %55 = sbr.rel (0) target = $region33
    $region32: #{tpu_custom_call.1} parent=1 // pred_region
      %56 = dma.done [#allocation5], 1024
    $region33: #{tpu_custom_call.1} parent=1 // pred_fallthru
      _
    %v58 = vld [vmem:[#allocation2] sm:$0xff]
    %v59 = vld [vmem:[#allocation4] sm:$0xff]
    %v60 = vld [vmem:[%s2] sm:$0x1]
    %v62 = vlaneseq
    %v63 = vshrl.u32 %v62, 7
    %v64 = vsub.s32 0, %v63
    %v65 = vrot.slane %v60, %v64
    %vm67 = vcmask 64512
    %v69 = vsel %vm67, %v58, 0
    %71 = vmatprep.subr.mxu0 0.0
    %72 = vmatpush1.msra.mxu0 0.0
    %73 = vmatprep.subr.mxu0 0.0
    %74 = vmatpush1.msra.mxu0 0.0
    %75 = vmatprep.subr.mxu0 0.0
    %76 = vmatpush1.msra.mxu0 0.0
    %77 = vmatprep.subr.mxu0 0.0
    %78 = vmatpush1.msra.mxu0 0.0
    %79 = vmatprep.subr.mxu0 0.0
    %80 = vmatpush1.msra.mxu0 0.0
    %81 = vmatprep.subr.mxu0 0.0
    %82 = vmatpush1.msra.mxu0 0.0
    %83 = vmatprep.subr.mxu0 0.0
    %84 = vmatpush1.msra.mxu0 0.0
    %85 = vmatprep.subr.mxu0 0.0
    %86 = vmatpush1.msra.mxu0 0.0
    %87 = vmatprep.subr.mxu0 0.0
    %88 = vmatpush1.msra.mxu0 0.0
    %89 = vmatprep.subr.mxu0 0.0
    %90 = vmatpush1.msra.mxu0 0.0
    %91 = vmatprep.subr.mxu0 0.0
    %92 = vmatpush1.msra.mxu0 0.0
    %93 = vmatprep.subr.mxu0 0.0
    %94 = vmatpush1.msra.mxu0 0.0
    %95 = vmatprep.subr.mxu0 0.0
    %96 = vmatpush1.msra.mxu0 0.0
    %97 = vmatprep.subr.mxu0 0.0
    %98 = vmatpush1.msra.mxu0 0.0
    %99 = vmatprep.subr.mxu0 0.0
    %100 = vmatpush1.msra.mxu0 0.0
    %101 = vmatprep.subr.mxu0 0.0
    %102 = vmatpush1.msra.mxu0 %v59
    %103 = vmatprep.subr.mxu0 0.0
    %104 = vmatpush2.msra.mxu0 0.0
    %105 = vmatprep.subr.mxu0 0.0
    %106 = vmatpush2.msra.mxu0 0.0
    %107 = vmatprep.subr.mxu0 0.0
    %108 = vmatpush2.msra.mxu0 0.0
    %109 = vmatprep.subr.mxu0 0.0
    %110 = vmatpush2.msra.mxu0 0.0
    %111 = vmatprep.subr.mxu0 0.0
    %112 = vmatpush2.msra.mxu0 0.0
    %113 = vmatprep.subr.mxu0 0.0
    %114 = vmatpush2.msra.mxu0 0.0
    %115 = vmatprep.subr.mxu0 0.0
    %116 = vmatpush2.msra.mxu0 0.0
    %117 = vmatprep.subr.mxu0 0.0
    %118 = vmatpush2.msra.mxu0 0.0
    %119 = vmatprep.subr.mxu0 0.0
    %120 = vmatpush2.msra.mxu0 0.0
    %121 = vmatprep.subr.mxu0 0.0
    %122 = vmatpush2.msra.mxu0 0.0
    %123 = vmatprep.subr.mxu0 0.0
    %124 = vmatpush2.msra.mxu0 0.0
    %125 = vmatprep.subr.mxu0 0.0
    %126 = vmatpush2.msra.mxu0 0.0
    %127 = vmatprep.subr.mxu0 0.0
    %128 = vmatpush2.msra.mxu0 0.0
    %129 = vmatprep.subr.mxu0 0.0
    %130 = vmatpush2.msra.mxu0 0.0
    %131 = vmatprep.subr.mxu0 0.0
    %132 = vmatpush2.msra.mxu0 0.0
    %133 = vmatprep.subr.mxu0 0.0
    %134 = vmatpush2.msra.mxu0 0.0
    %135 = vmatprep.mubr.f32.mxu0 0.0
    %136 = vmatmul.mubr.f32.gmra.mxu0 %v69
    %v137 = vpop.f32.mrf.mxu0
    %v138 = vadd.f32 %v65, %v137
    %v139 = vpop.f32.mrf.mxu0
    %140 = vdwg.mxu0
    %v141 = vmax.f32 %v138, 0.0
    %v142 = vpack.c.bf16 %v141, %v141
    %v143 = vld [vmem:[#allocation6] sm:$0xf]
    %v144 = vld [vmem:[#allocation6 + $0x4] sm:$0xf]
    %v145 = vld [vmem:[#allocation6 + $0x8] sm:$0xf]
    %v146 = vld [vmem:[#allocation6 + $0xc] sm:$0xf]
    %v147 = vld [vmem:[#allocation6 + $0x10] sm:$0xf]
    %v148 = vld [vmem:[#allocation6 + $0x14] sm:$0xf]
    %v149 = vld [vmem:[#allocation6 + $0x18] sm:$0xf]
    %v150 = vld [vmem:[#allocation6 + $0x1c] sm:$0xf]
    %v151 = vld [vmem:[#allocation6 + $0x20] sm:$0xf]
    %v152 = vld [vmem:[#allocation6 + $0x24] sm:$0xf]
    %v153 = vld [vmem:[#allocation6 + $0x28] sm:$0xf]
    %v154 = vld [vmem:[#allocation6 + $0x2c] sm:$0xf]
    %v155 = vld [vmem:[#allocation6 + $0x30] sm:$0xf]
    %v156 = vld [vmem:[#allocation6 + $0x34] sm:$0xf]
    %v157 = vld [vmem:[#allocation6 + $0x38] sm:$0xf]
    %v158 = vld [vmem:[#allocation6 + $0x3c] sm:$0xf]
    %v175 = vunpack.c.l.b16 %v143
    %v176 = vunpack.c.l.b16 %v144
    %v177 = vunpack.c.l.b16 %v145
    %v178 = vunpack.c.l.b16 %v146
    %v179 = vunpack.c.l.b16 %v147
    %v180 = vunpack.c.l.b16 %v148
    %v181 = vunpack.c.l.b16 %v149
    %v182 = vunpack.c.l.b16 %v150
    %v183 = vunpack.c.l.b16 %v151
    %v184 = vunpack.c.l.b16 %v152
    %v185 = vunpack.c.l.b16 %v153
    %v186 = vunpack.c.l.b16 %v154
    %v187 = vunpack.c.l.b16 %v155
    %v188 = vunpack.c.l.b16 %v156
    %v189 = vunpack.c.l.b16 %v157
    %v190 = vunpack.c.l.b16 %v158
    %v191 = vpack.c.b16 %v176, %v175
    %v192 = vpack.c.b16 %v178, %v177
    %v193 = vpack.c.b16 %v180, %v179
    %v194 = vpack.c.b16 %v182, %v181
    %v195 = vpack.c.b16 %v184, %v183
    %v196 = vpack.c.b16 %v186, %v185
    %v197 = vpack.c.b16 %v188, %v187
    %v198 = vpack.c.b16 %v190, %v189
    %207 = vmatprep.subr.bf16.mxu0 0
    %208 = vmatpush1.bf16.msra.mxu0 %v198
    %209 = vmatprep.subr.bf16.mxu0 0
    %210 = vmatpush1.bf16.msra.mxu0 %v197
    %211 = vmatprep.subr.bf16.mxu0 0
    %212 = vmatpush1.bf16.msra.mxu0 %v196
    %213 = vmatprep.subr.bf16.mxu0 0
    %214 = vmatpush1.bf16.msra.mxu0 %v195
    %215 = vmatprep.subr.bf16.mxu0 0
    %216 = vmatpush1.bf16.msra.mxu0 %v194
    %217 = vmatprep.subr.bf16.mxu0 0
    %218 = vmatpush1.bf16.msra.mxu0 %v193
    %219 = vmatprep.subr.bf16.mxu0 0
    %220 = vmatpush1.bf16.msra.mxu0 %v192
    %221 = vmatprep.subr.bf16.mxu0 0
    %222 = vmatpush1.bf16.msra.mxu0 %v191
    %223 = vmatprep.subr.bf16.mxu0 0
    %224 = vmatpush2.bf16.msra.mxu0 0
    %225 = vmatprep.subr.bf16.mxu0 0
    %226 = vmatpush2.bf16.msra.mxu0 0
    %227 = vmatprep.subr.bf16.mxu0 0
    %228 = vmatpush2.bf16.msra.mxu0 0
    %229 = vmatprep.subr.bf16.mxu0 0
    %230 = vmatpush2.bf16.msra.mxu0 0
    %231 = vmatprep.subr.bf16.mxu0 0
    %232 = vmatpush2.bf16.msra.mxu0 0
    %233 = vmatprep.subr.bf16.mxu0 0
    %234 = vmatpush2.bf16.msra.mxu0 0
    %235 = vmatprep.subr.bf16.mxu0 0
    %236 = vmatpush2.bf16.msra.mxu0 0
    %237 = vmatprep.subr.bf16.mxu0 0
    %238 = vmatpush2.bf16.msra.mxu0 0
    %239 = vmatprep.mubr.bf16.mxu0 0
    %240 = vmatmul.mubr.bf16.gmra.mxu0 %v142
    %v241 = vpop.f32.mrf.mxu0
    %v242 = vadd.f32 0.0, %v241
    %v243 = vpop.f32.mrf.mxu0
    %v244 = vpop.f32.mrf.mxu0
    %v245 = vpop.f32.mrf.mxu0
    %246 = vdwg.mxu0
    %v247 = vld [vmem:[%s4] sm:$0x1]
    %v249 = vlaneseq
    %v250 = vshrl.u32 %v249, 7
    %v251 = vsub.s32 0, %v250
    %v252 = vrot.slane %v247, %v251
    %v254 = vadd.f32 %v242, %v252
    %v255 = vtanh.pop %v254
    %v256 = vmul.f32 %v255, 2.0
    %vm257 = vcmask 15360
    %258 = vst.msk [vmem:[%s5] sm:$0xff] %vm257, %v256
    // Predicated region
    $region34: #{tpu_custom_call.1} parent=1 // pred_check
      _
    $region35: #{tpu_custom_call.1} parent=1 // pred_check_branch
      %260 = sbr.rel (0) target = $region37
    $region36: #{tpu_custom_call.1} parent=1 // pred_region
      _
    $region37: #{tpu_custom_call.1} parent=1 // pred_fallthru
      _
    // Predicated region
    $region38: #{tpu_custom_call.1} parent=1 // pred_check
      _
    $region39: #{tpu_custom_call.1} parent=1 // pred_check_branch
      %262 = sbr.rel (0) target = $region41
    $region40: #{tpu_custom_call.1} parent=1 // pred_region
      _
    $region41: #{tpu_custom_call.1} parent=1 // pred_fallthru
      _
    %263 = vsyncpa [#allocation3], 1
    %264 = vsyncpa [#allocation5], 1

</llo_original>
